<compile_context>
chip_gen: v7x
topology: tpu7x:2x2x1
jax: 0.10.0
libtpu: 0.0.40
codegen_flags: <defaults>
</compile_context>

<pallas_src>
import functools

import jax
import jax.numpy as jnp
import numpy as np
from jax import lax
from jax.experimental import pallas as pl
from jax.experimental.pallas import tpu as pltpu

EPS = 1e-5


def _round_up(a, b):
    return (a + b - 1) // b * b


def _cdiv(a, b):
    return -(-a // b)


def _pad_to_patch_multiple(x, P):
    # Mirrors the reference module's functional.pad call EXACTLY, including
    # its quirk of padding BOTH spatial dims whenever either is ragged (a
    # divisible dim then receives a full extra patch of zeros).
    _, _, H, W = x.shape
    if H % P != 0 or W % P != 0:
        x = jnp.pad(x, ((0, 0), (0, 0), (0, P - H % P), (0, P - W % P)))
    return x


def _choose_row_tile(n_rows, tm, granule=16, min_steps=2):
    """Row tile: as large as requested (HBM roofline) but with an even number
    of grid steps >= min_steps so v7x's 2 TensorCores split the parallel row
    axis evenly.  Rows stay on a 16-row granule (bf16 sublane packing)."""
    if n_rows <= granule:
        return n_rows                      # single full-array block
    tm = max(granule, _round_up(tm, granule))
    steps = max(min_steps, _cdiv(n_rows, tm))
    if steps % 2:                          # even split across 2 TCs on v7x
        steps += 1
    tile = _round_up(_cdiv(n_rows, steps), granule)
    return max(granule, min(tile, _round_up(n_rows, granule)))


def _patch_embed_kernel(p_ref, w_ref, b_ref, g_ref, bt_ref, o_ref, *, apply_norm):
    # p_ref: (TM, K) bf16   w_ref: (K, E) bf16   b/g/bt_ref: (1, E) f32
    # o_ref: (TM, E) in out_dtype (f32 or bf16)
    z = jnp.dot(p_ref[...], w_ref[...], preferred_element_type=jnp.float32)
    z = z + b_ref[...]
    if apply_norm:
        # Two-pass LayerNorm statistics in f32; both cross-lane reduces land
        # on the XLU slot, which is otherwise idle in this kernel.
        mean = jnp.mean(z, axis=-1, keepdims=True)
        zc = z - mean
        var = jnp.mean(zc * zc, axis=-1, keepdims=True)
        z = zc * lax.rsqrt(var + EPS) * g_ref[...] + bt_ref[...]
        # TODO(synk): on v7x, if the bundle dump shows VALU binding once the
        # output is bf16, do the final scale/shift in packed bf16.
    o_ref[...] = z.astype(o_ref.dtype)


def patch_embed(x, conv_w, conv_b, gamma=None, beta=None, *,
                patch_size=4, tm=4096, out_dtype=None):
    """Pallas PatchEmbed forward.

    x:        (B, Cin, H, W) float32
    conv_w:   (E, Cin, P, P) float32  (nn.Conv2d weight, stride = kernel = P)
    conv_b:   (E,)           float32
    gamma/beta: (E,) LayerNorm params, or None for the Identity norm.
    tm:       row-tile target; sweep ~2048 (v5e), ~4096 (v6e), ~8192 (v7x).
    out_dtype: kernel output dtype; default x.dtype.  Use jnp.bfloat16 when
               downstream Swin blocks run in bf16 (saves ~40% HBM traffic).

    Returns (tokens, Hout, Wout) with tokens: (B, Hout*Wout, E).
    """
    B, Cin, H, W = x.shape
    E, Cw, P, P2 = conv_w.shape
    assert Cw == Cin and P == patch_size and P2 == patch_size
    apply_norm = gamma is not None
    out_dtype = x.dtype if out_dtype is None else out_dtype

    x = _pad_to_patch_multiple(x, P)
    Hp, Wp = x.shape[2], x.shape[3]
    Gh, Gw = Hp // P, Wp // P

    # Space-to-depth: (B, Cin, Hp, Wp) -> (N, K) with K = Cin*P*P, rows in
    # (b, gh, gw) raster order and columns in (c, ph, pw) order -- the same
    # flattening nn.Conv2d uses for its weight.  bf16 halves im2col traffic.
    # TODO(synk): fuse this gather into the kernel (strided in-kernel loads /
    # pltpu.einshape) so the im2col matrix is never materialized in HBM.
    K = Cin * P * P
    N = B * Gh * Gw
    patches = x.reshape(B, Cin, Gh, P, Gw, P)
    patches = patches.transpose(0, 2, 4, 1, 3, 5).reshape(N, K)
    patches = patches.astype(jnp.bfloat16)

    w_mat = conv_w.reshape(E, K).T.astype(jnp.bfloat16)      # (K, E)
    b_row = conv_b.reshape(1, E).astype(jnp.float32)
    if apply_norm:
        g_row = gamma.reshape(1, E).astype(jnp.float32)
        bt_row = beta.reshape(1, E).astype(jnp.float32)
    else:
        g_row = jnp.ones((1, E), jnp.float32)
        bt_row = jnp.zeros((1, E), jnp.float32)

    # Large tiles, even step count, cdiv grid.  No wrapper pad / slice copies:
    # out_shape is exactly (N, E); a ragged last block is masked by Pallas.
    tm_eff = _choose_row_tile(N, tm)
    grid = (pl.cdiv(N, tm_eff),)

    kernel = functools.partial(_patch_embed_kernel, apply_norm=apply_norm)
    out = pl.pallas_call(
        kernel,
        out_shape=jax.ShapeDtypeStruct((N, E), out_dtype),
        grid_spec=pltpu.PrefetchScalarGridSpec(
            num_scalar_prefetch=0,
            grid=grid,
            in_specs=[
                pl.BlockSpec((tm_eff, K), lambda i: (i, 0)),   # patch rows
                pl.BlockSpec((K, E), lambda i: (0, 0)),        # projection weight
                pl.BlockSpec((1, E), lambda i: (0, 0)),        # conv bias
                pl.BlockSpec((1, E), lambda i: (0, 0)),        # LN gamma
                pl.BlockSpec((1, E), lambda i: (0, 0)),        # LN beta
            ],
            out_specs=pl.BlockSpec((tm_eff, E), lambda i: (i, 0)),
        ),
        compiler_params=pltpu.CompilerParams(
            dimension_semantics=("parallel",),
        ),
    )(patches, w_mat, b_row, g_row, bt_row)

    return out.reshape(B, Gh * Gw, E), Gh, Gw


def _reference(x, conv_w, conv_b, gamma=None, beta=None, *, patch_size=4):
    # Pure-JAX mirror of the PyTorch forward (f32 throughout).
    P = patch_size
    x = _pad_to_patch_multiple(x, P)
    y = lax.conv_general_dilated(
        x, conv_w, window_strides=(P, P), padding="VALID",
        dimension_numbers=("NCHW", "OIHW", "NCHW"))
    y = y + conv_b[None, :, None, None]
    B, E, Gh, Gw = y.shape
    y = y.reshape(B, E, Gh * Gw).transpose(0, 2, 1)
    if gamma is not None:
        mean = jnp.mean(y, axis=-1, keepdims=True)
        var = jnp.mean(jnp.square(y - mean), axis=-1, keepdims=True)
        y = (y - mean) / jnp.sqrt(var + EPS) * gamma + beta
    return y, Gh, Gw


if __name__ == "__main__":
    key = jax.random.PRNGKey(0)
    kx1, kx2, kx3, kw, kb = jax.random.split(key, 5)

    Cin, P, E = 3, 4, 128
    bound = 1.0 / np.sqrt(Cin * P * P)
    conv_w = jax.random.uniform(kw, (E, Cin, P, P), minval=-bound, maxval=bound,
                                dtype=jnp.float32)
    conv_b = jax.random.uniform(kb, (E,), minval=-bound, maxval=bound,
                                dtype=jnp.float32)
    gamma = jnp.ones((E,), jnp.float32)     # nn.LayerNorm init
    beta = jnp.zeros((E,), jnp.float32)

    # Case 1: divisible spatial size, norm_layer = LayerNorm, f32 output.
    x1 = jax.random.normal(kx1, (2, Cin, 16, 16), dtype=jnp.float32)
    out1, h1, w1 = patch_embed(x1, conv_w, conv_b, gamma, beta, patch_size=P)
    out1 = jax.block_until_ready(out1)
    ref1, rh1, rw1 = _reference(x1, conv_w, conv_b, gamma, beta, patch_size=P)
    assert (h1, w1) == (rh1, rw1)
    np.testing.assert_allclose(np.asarray(out1), np.asarray(ref1),
                               rtol=2e-2, atol=2e-2)

    # Case 2: ragged spatial size (exercises the pad path), Identity norm.
    x2 = jax.random.normal(kx2, (2, Cin, 14, 14), dtype=jnp.float32)
    out2, h2, w2 = patch_embed(x2, conv_w, conv_b, patch_size=P)
    out2 = jax.block_until_ready(out2)
    ref2, rh2, rw2 = _reference(x2, conv_w, conv_b, patch_size=P)
    assert (h2, w2) == (rh2, rw2)
    np.testing.assert_allclose(np.asarray(out2), np.asarray(ref2),
                               rtol=2e-2, atol=2e-2)

    # Case 3: row count not a multiple of the row tile (ragged last block,
    # masked in-kernel -- no wrapper pad/slice copies) + bf16 kernel output.
    x3 = jax.random.normal(kx3, (3, Cin, 16, 16), dtype=jnp.float32)
    out3, h3, w3 = patch_embed(x3, conv_w, conv_b, gamma, beta, patch_size=P,
                               out_dtype=jnp.bfloat16)
    out3 = jax.block_until_ready(out3)
    ref3, rh3, rw3 = _reference(x3, conv_w, conv_b, gamma, beta, patch_size=P)
    assert (h3, w3) == (rh3, rw3)
    np.testing.assert_allclose(np.asarray(out3.astype(jnp.float32)),
                               np.asarray(ref3), rtol=5e-2, atol=5e-2)

    print("KERNEL_OK")
</pallas_src>

<mosaic_0001>
module attributes {stable_mosaic.version = 11 : i64} {
  func.func @_patch_embed_kernel(%arg0: i32, %arg1: memref<16x48xbf16, #tpu.memory_space<vmem>>, %arg2: memref<48x128xbf16, #tpu.memory_space<vmem>>, %arg3: memref<1x128xf32, #tpu.memory_space<vmem>>, %arg4: memref<1x128xf32, #tpu.memory_space<vmem>>, %arg5: memref<1x128xf32, #tpu.memory_space<vmem>>, %arg6: memref<16x128xf32, #tpu.memory_space<vmem>>) attributes {dimension_semantics = [#tpu.dimension_semantics<parallel>], iteration_bounds = array<i64: 2>, scalar_prefetch = 0 : i64, scratch_operands = 0 : i64, tpu.core_type = #tpu.core_type<tc>, window_params = [{transform_indices = @transform_0, window_bounds = array<i64: 16, 48>}, {pipeline_mode = #tpu.pipeline_mode<synchronous>, transform_indices = @transform_1, window_bounds = array<i64: 48, 128>}, {pipeline_mode = #tpu.pipeline_mode<synchronous>, transform_indices = @transform_2, window_bounds = array<i64: 1, 128>}, {pipeline_mode = #tpu.pipeline_mode<synchronous>, transform_indices = @transform_3, window_bounds = array<i64: 1, 128>}, {pipeline_mode = #tpu.pipeline_mode<synchronous>, transform_indices = @transform_4, window_bounds = array<i64: 1, 128>}, {transform_indices = @transform_5, window_bounds = array<i64: 16, 128>}]} {
    %c0 = arith.constant 0 : index
    %c0_0 = arith.constant 0 : index
    %0 = vector.load %arg1[%c0, %c0_0] : memref<16x48xbf16, #tpu.memory_space<vmem>>, vector<16x48xbf16>
    %c0_1 = arith.constant 0 : index
    %c0_2 = arith.constant 0 : index
    %1 = vector.load %arg2[%c0_1, %c0_2] : memref<48x128xbf16, #tpu.memory_space<vmem>>, vector<48x128xbf16>
    %cst = arith.constant dense<0.000000e+00> : vector<16x128xf32>
    %2 = tpu.matmul %0, %1, %cst {dimension_numbers = #tpu.dot_dimension_numbers<[1], [0], [0], [1], [0, 0, 1, 1], [], []>} : vector<16x48xbf16>, vector<48x128xbf16>, vector<16x128xf32> -> vector<16x128xf32>
    %c0_3 = arith.constant 0 : index
    %c0_4 = arith.constant 0 : index
    %3 = vector.load %arg3[%c0_3, %c0_4] : memref<1x128xf32, #tpu.memory_space<vmem>>, vector<1x128xf32>
    %4 = vector.broadcast %3 : vector<1x128xf32> to vector<16x128xf32>
    %5 = arith.addf %2, %4 : vector<16x128xf32>
    %cst_5 = arith.constant dense<0.000000e+00> : vector<16xf32>
    %6 = vector.multi_reduction <add>, %5, %cst_5 [1] : vector<16x128xf32> to vector<16xf32>
    %7 = vector.shape_cast %6 : vector<16xf32> to vector<16x1xf32>
    %cst_6 = arith.constant 1.280000e+02 : f32
    %8 = vector.broadcast %cst_6 : f32 to vector<16x1xf32>
    %9 = arith.divf %7, %8 : vector<16x1xf32>
    %10 = vector.broadcast %9 : vector<16x1xf32> to vector<16x128xf32>
    %11 = arith.subf %5, %10 : vector<16x128xf32>
    %12 = arith.mulf %11, %11 : vector<16x128xf32>
    %cst_7 = arith.constant dense<0.000000e+00> : vector<16xf32>
    %13 = vector.multi_reduction <add>, %12, %cst_7 [1] : vector<16x128xf32> to vector<16xf32>
    %14 = vector.shape_cast %13 : vector<16xf32> to vector<16x1xf32>
    %cst_8 = arith.constant 1.280000e+02 : f32
    %15 = vector.broadcast %cst_8 : f32 to vector<16x1xf32>
    %16 = arith.divf %14, %15 : vector<16x1xf32>
    %cst_9 = arith.constant 9.99999974E-6 : f32
    %17 = vector.broadcast %cst_9 : f32 to vector<16x1xf32>
    %18 = arith.addf %16, %17 : vector<16x1xf32>
    %19 = math.rsqrt %18 : vector<16x1xf32>
    %20 = vector.broadcast %19 : vector<16x1xf32> to vector<16x128xf32>
    %21 = arith.mulf %11, %20 : vector<16x128xf32>
    %c0_10 = arith.constant 0 : index
    %c0_11 = arith.constant 0 : index
    %22 = vector.load %arg4[%c0_10, %c0_11] : memref<1x128xf32, #tpu.memory_space<vmem>>, vector<1x128xf32>
    %23 = vector.broadcast %22 : vector<1x128xf32> to vector<16x128xf32>
    %24 = arith.mulf %21, %23 : vector<16x128xf32>
    %c0_12 = arith.constant 0 : index
    %c0_13 = arith.constant 0 : index
    %25 = vector.load %arg5[%c0_12, %c0_13] : memref<1x128xf32, #tpu.memory_space<vmem>>, vector<1x128xf32>
    %26 = vector.broadcast %25 : vector<1x128xf32> to vector<16x128xf32>
    %27 = arith.addf %24, %26 : vector<16x128xf32>
    %c0_14 = arith.constant 0 : index
    %c0_15 = arith.constant 0 : index
    %28 = vector.load %arg6[%c0_14, %c0_15] : memref<16x128xf32, #tpu.memory_space<vmem>>, vector<16x128xf32>
    tpu.vector_store %arg6[%c0_14, %c0_15], %27 {strides = array<i32>} : memref<16x128xf32, #tpu.memory_space<vmem>>, vector<16x128xf32>,
    return
  }
  func.func @transform_0(%arg0: i32) -> (i32, i32) {
    %c0_i32 = arith.constant 0 : i32
    %c0_i32_0 = arith.constant 0 : i32
    return %arg0, %c0_i32 : i32, i32
  }
  func.func @transform_1(%arg0: i32) -> (i32, i32) {
    %c0_i32 = arith.constant 0 : i32
    %c0_i32_0 = arith.constant 0 : i32
    %c0_i32_1 = arith.constant 0 : i32
    return %c0_i32, %c0_i32_0 : i32, i32
  }
  func.func @transform_2(%arg0: i32) -> (i32, i32) {
    %c0_i32 = arith.constant 0 : i32
    %c0_i32_0 = arith.constant 0 : i32
    %c0_i32_1 = arith.constant 0 : i32
    return %c0_i32, %c0_i32_0 : i32, i32
  }
  func.func @transform_3(%arg0: i32) -> (i32, i32) {
    %c0_i32 = arith.constant 0 : i32
    %c0_i32_0 = arith.constant 0 : i32
    %c0_i32_1 = arith.constant 0 : i32
    return %c0_i32, %c0_i32_0 : i32, i32
  }
  func.func @transform_4(%arg0: i32) -> (i32, i32) {
    %c0_i32 = arith.constant 0 : i32
    %c0_i32_0 = arith.constant 0 : i32
    %c0_i32_1 = arith.constant 0 : i32
    return %c0_i32, %c0_i32_0 : i32, i32
  }
  func.func @transform_5(%arg0: i32) -> (i32, i32) {
    %c0_i32 = arith.constant 0 : i32
    %c0_i32_0 = arith.constant 0 : i32
    return %arg0, %c0_i32 : i32, i32
  }
}

</mosaic_0001>

<llo_original>
// kernel: tpu_custom_call.1
$region0: #{tpu_custom_call.1}
  #allocation0 [shape = 'u32[]', space=smem, size = 0x4, offset = 0x4, fixed_abs, tag = 'smem constant byte address 0x4 - core index']
  #allocation1 [shape = 'u32[144,128]{1,0:T(1,128)}', space=vmem, size = 0x12000, scoped, tag = 'internal scratch']
  %s0 = inlined_call_operand.hbm [shape: bf16[32,48], index: 0, kind: input, shape index: {}]
  %s1 = inlined_call_operand.hbm [shape: bf16[48,128], index: 1, kind: input, shape index: {}]
  %s2 = inlined_call_operand.vmem [shape: f32[1,128], index: 2, kind: input, shape index: {}]
  %s3 = inlined_call_operand.vmem [shape: f32[1,128], index: 3, kind: input, shape index: {}]
  %s4 = inlined_call_operand.vmem [shape: f32[1,128], index: 4, kind: input, shape index: {}]
  %s5 = inlined_call_operand.hbm [shape: f32[32,128], index: 5, kind: output, shape index: {}]
  %s6 = sld [smem:[#allocation0]]
  $region61: #{tpu_custom_call.1} parent=0
    _
  %s8 = ssub.s32 1, %s6
  %s9 = scalar_select 0, %s8, %s6
  $region1: #{tpu_custom_call.1} parent=0
    #allocation2 [shape = 'u8[8192]{0}', space=vmem, size = 0x2000, scoped, tag = 'input window, operand 0']
    #allocation3 [shape = 's32[2]{0}', space=sflag, size = 0x8, scoped, tag = 'scoped memory for tpu_custom_call.1']
    #allocation4 [shape = 's32[2]{0}', space=sflag, size = 0x8, scoped, tag = 'scoped memory for tpu_custom_call.1']
    #allocation5 [shape = 'u8[12288]{0}', space=vmem, size = 0x3000, scoped, tag = 'input window, operand 1, single buffered']
    #allocation6 [shape = 's32[1]{0}', space=sflag, size = 0x4, scoped, tag = 'scoped memory for tpu_custom_call.1']
    #allocation7 [shape = 'u8[16384]{0}', space=vmem, size = 0x4000, scoped, tag = 'output window, operand 0']
    %10 = vsyncpa [#allocation3], 0
    %s11 = scalar_lea.sflag [#allocation3], 1
    %12 = vsyncpa %s11, 0
    %13 = vsyncpa [#allocation6], 0
    %14 = vsyncpa [#allocation4], 0
    %s15 = scalar_lea.sflag [#allocation4], 1
    %16 = vsyncpa %s15, 0
    loop: start=0, step=1, limit=4
    $region2: #{tpu_custom_call.1} parent=1 // loop_pre_header
      _
    $region3: #{tpu_custom_call.1} parent=1 // loop_header
      %s18 = sphi 0, %s22
      %p19 = scmp.ge.s32.totalorder %s18, 4
      %s28 = sphi 0, %s30
      %s31 = sphi 0, %s28
      %s32 = sphi 0, %s31
      %s48 = sphi 0, %s32
      %s52 = sphi 0, %s52
      %s54 = sphi 0, %s52
      %s55 = sphi 0, %s54
      %s69 = sphi 0, %s55
      %s73 = sphi 0, %s73
      %s75 = sphi 0, %s73
      %s76 = sphi 0, %s75
      %s90 = sphi 0, %s76
      %s94 = sphi 0, %s94
      %s96 = sphi 0, %s94
      %s97 = sphi 0, %s96
      %s111 = sphi 0, %s97
      %s115 = sphi 0, %s115
      %s117 = sphi 0, %s115
      %s118 = sphi 0, %s117
      %s132 = sphi 0, %s118
      %s138 = sphi 0, %s140
      %s141 = sphi 0, %s138
      %s142 = sphi 0, %s141
      %s158 = sphi 0, %s142
    $region4: #{tpu_custom_call.1} parent=1 // loop_header_branch
      %21 = sbr.rel (%p19) target = $region8
    $region5: #{tpu_custom_call.1} parent=1 // loop_body
      %s23 = ssub.s32 %s18, 1
      %s24 = ssub.s32 %s18, 2
      %s25 = sadd.s32 %s18, 1
      %s26 = ssub.s32 %s18, %s25
      %p27 = scmp.eq.s32.totalorder %s26, 0
      %s29 = sadd.s32 %s28, 1
      %s30 = scalar_select %p27, %s28, %s29
      %p33 = pneg %p27
      %p34 = scmp.eq.s32.totalorder %s18, 1
      %p35 = por %p33, %p34
      %p36 = scmp.ne.s32.totalorder %s28, %s31
      %p37 = scmp.eq.s32.totalorder %s18, 0
      %p38 = por %p36, %p37
      %p39 = scmp.ne.s32.totalorder %s28, %s31
      %p40 = scmp.eq.s32.totalorder %s23, 1
      %p41 = por %p39, %p40
      %p42 = scmp.ne.s32.totalorder %s31, %s32
      %p43 = scmp.eq.s32.totalorder %s23, 0
      %p44 = por %p42, %p43
      %p45 = scmp.ne.s32.totalorder %s31, %s32
      %p46 = scmp.eq.s32.totalorder %s24, 1
      %p47 = por %p45, %p46
      %p49 = scmp.ne.s32.totalorder %s32, %s48
      %p50 = scmp.eq.s32.totalorder %s24, 0
      %p51 = por %p49, %p50
      %s53 = sadd.s32 %s52, 1
      %p56 = scmp.eq.s32.totalorder %s18, 1
      %p57 = scmp.ne.s32.totalorder %s52, %s54
      %p58 = scmp.eq.s32.totalorder %s18, 0
      %p59 = por %p57, %p58
      %p60 = scmp.ne.s32.totalorder %s52, %s54
      %p61 = scmp.eq.s32.totalorder %s23, 1
      %p62 = por %p60, %p61
      %p63 = scmp.ne.s32.totalorder %s54, %s55
      %p64 = scmp.eq.s32.totalorder %s23, 0
      %p65 = por %p63, %p64
      %p66 = scmp.ne.s32.totalorder %s54, %s55
      %p67 = scmp.eq.s32.totalorder %s24, 1
      %p68 = por %p66, %p67
      %p70 = scmp.ne.s32.totalorder %s55, %s69
      %p71 = scmp.eq.s32.totalorder %s24, 0
      %p72 = por %p70, %p71
      %s74 = sadd.s32 %s73, 1
      %p77 = scmp.eq.s32.totalorder %s18, 1
      %p78 = scmp.ne.s32.totalorder %s73, %s75
      %p79 = scmp.eq.s32.totalorder %s18, 0
      %p80 = por %p78, %p79
      %p81 = scmp.ne.s32.totalorder %s73, %s75
      %p82 = scmp.eq.s32.totalorder %s23, 1
      %p83 = por %p81, %p82
      %p84 = scmp.ne.s32.totalorder %s75, %s76
      %p85 = scmp.eq.s32.totalorder %s23, 0
      %p86 = por %p84, %p85
      %p87 = scmp.ne.s32.totalorder %s75, %s76
      %p88 = scmp.eq.s32.totalorder %s24, 1
      %p89 = por %p87, %p88
      %p91 = scmp.ne.s32.totalorder %s76, %s90
      %p92 = scmp.eq.s32.totalorder %s24, 0
      %p93 = por %p91, %p92
      %s95 = sadd.s32 %s94, 1
      %p98 = scmp.eq.s32.totalorder %s18, 1
      %p99 = scmp.ne.s32.totalorder %s94, %s96
      %p100 = scmp.eq.s32.totalorder %s18, 0
      %p101 = por %p99, %p100
      %p102 = scmp.ne.s32.totalorder %s94, %s96
      %p103 = scmp.eq.s32.totalorder %s23, 1
      %p104 = por %p102, %p103
      %p105 = scmp.ne.s32.totalorder %s96, %s97
      %p106 = scmp.eq.s32.totalorder %s23, 0
      %p107 = por %p105, %p106
      %p108 = scmp.ne.s32.totalorder %s96, %s97
      %p109 = scmp.eq.s32.totalorder %s24, 1
      %p110 = por %p108, %p109
      %p112 = scmp.ne.s32.totalorder %s97, %s111
      %p113 = scmp.eq.s32.totalorder %s24, 0
      %p114 = por %p112, %p113
      %s116 = sadd.s32 %s115, 1
      %p119 = scmp.eq.s32.totalorder %s18, 1
      %p120 = scmp.ne.s32.totalorder %s115, %s117
      %p121 = scmp.eq.s32.totalorder %s18, 0
      %p122 = por %p120, %p121
      %p123 = scmp.ne.s32.totalorder %s115, %s117
      %p124 = scmp.eq.s32.totalorder %s23, 1
      %p125 = por %p123, %p124
      %p126 = scmp.ne.s32.totalorder %s117, %s118
      %p127 = scmp.eq.s32.totalorder %s23, 0
      %p128 = por %p126, %p127
      %p129 = scmp.ne.s32.totalorder %s117, %s118
      %p130 = scmp.eq.s32.totalorder %s24, 1
      %p131 = por %p129, %p130
      %p133 = scmp.ne.s32.totalorder %s118, %s132
      %p134 = scmp.eq.s32.totalorder %s24, 0
      %p135 = por %p133, %p134
      %s136 = ssub.s32 %s18, %s25
      %p137 = scmp.eq.s32.totalorder %s136, 0
      %s139 = sadd.s32 %s138, 1
      %s140 = scalar_select %p137, %s138, %s139
      %p143 = pneg %p137
      %p144 = scmp.eq.s32.totalorder %s18, 1
      %p145 = por %p143, %p144
      %p146 = scmp.ne.s32.totalorder %s138, %s141
      %p147 = scmp.eq.s32.totalorder %s18, 0
      %p148 = por %p146, %p147
      %p149 = scmp.ne.s32.totalorder %s138, %s141
      %p150 = scmp.eq.s32.totalorder %s23, 1
      %p151 = por %p149, %p150
      %p152 = scmp.ne.s32.totalorder %s141, %s142
      %p153 = scmp.eq.s32.totalorder %s23, 0
      %p154 = por %p152, %p153
      %p155 = scmp.ne.s32.totalorder %s141, %s142
      %p156 = scmp.eq.s32.totalorder %s24, 1
      %p157 = por %p155, %p156
      %p159 = scmp.ne.s32.totalorder %s142, %s158
      %p160 = scmp.eq.s32.totalorder %s24, 0
      %p161 = por %p159, %p160
      %p162 = scmp.le.s32.totalorder 1, %s18
      %p163 = scmp.lt.s32.totalorder %s18, 3
      %p164 = pnand %p162, %p163
      %p165 = pneg %p164
      // Predicated region
      $region9: #{tpu_custom_call.1} parent=5 // pred_check
        _
      $region10: #{tpu_custom_call.1} parent=5 // pred_check_branch
        %167 = sbr.rel (%p164) target = $region12
      $region11: #{tpu_custom_call.1} parent=5 // pred_region
        %s168 = ssub.s32 %s18, 1
        // Predicated region
        $region13: #{tpu_custom_call.1} parent=11 // pred_check
          %p169 = pneg %p65
        $region14: #{tpu_custom_call.1} parent=11 // pred_check_branch
          %171 = sbr.rel (%p169) target = $region16
        $region15: #{tpu_custom_call.1} parent=11 // pred_region
          %s173 = ssub.s32 384, 384
          %174 = vsyncadd [#allocation6], %s173
          %s175 = sshll.u32 [#allocation5], 4
          %s176 = int_to_ptr.vmem [resolvable:$true] %s175
          %181 = dma.hbm_to_vmem [thread:$0]  %s1, 384, %s176, [#allocation6], 64, 64, 4
        $region16: #{tpu_custom_call.1} parent=11 // pred_fallthru
          _
        // Predicated region
        $region17: #{tpu_custom_call.1} parent=11 // pred_check
          %p182 = pneg %p86
        $region18: #{tpu_custom_call.1} parent=11 // pred_check_branch
          %184 = sbr.rel (%p182) target = $region20
        $region19: #{tpu_custom_call.1} parent=11 // pred_region
          _
        $region20: #{tpu_custom_call.1} parent=11 // pred_fallthru
          _
        // Predicated region
        $region21: #{tpu_custom_call.1} parent=11 // pred_check
          %p185 = pneg %p107
        $region22: #{tpu_custom_call.1} parent=11 // pred_check_branch
          %187 = sbr.rel (%p185) target = $region24
        $region23: #{tpu_custom_call.1} parent=11 // pred_region
          _
        $region24: #{tpu_custom_call.1} parent=11 // pred_fallthru
          _
        // Predicated region
        $region25: #{tpu_custom_call.1} parent=11 // pred_check
          %p188 = pneg %p128
        $region26: #{tpu_custom_call.1} parent=11 // pred_check_branch
          %190 = sbr.rel (%p188) target = $region28
        $region27: #{tpu_custom_call.1} parent=11 // pred_region
          _
        $region28: #{tpu_custom_call.1} parent=11 // pred_fallthru
          _
      $region12: #{tpu_custom_call.1} parent=5 // pred_fallthru
        _
      %p191 = scmp.lt.s32.totalorder %s18, 2
      // Predicated region
      $region29: #{tpu_custom_call.1} parent=5 // pred_check
        %p192 = pneg %p191
      $region30: #{tpu_custom_call.1} parent=5 // pred_check_branch
        %194 = sbr.rel (%p192) target = $region32
      $region31: #{tpu_custom_call.1} parent=5 // pred_region
        // Predicated region
        $region33: #{tpu_custom_call.1} parent=31 // pred_check
          %p195 = pneg %p38
        $region34: #{tpu_custom_call.1} parent=31 // pred_check_branch
          %197 = sbr.rel (%p195) target = $region36
        $region35: #{tpu_custom_call.1} parent=31 // pred_region
          %s198 = sand.u32 %s28, 1
          %s199 = scalar_lea.sflag [#allocation3], %s198
          %s200 = sand.u32 %s28, 1
          %s201 = smul.addr %s200, 8
          %s202 = scalar_lea.vmem [#allocation2], %s201
          %s203 = smul.u32 2, %s18
          %s205 = ssub.s32 128, 128
          %206 = vsyncadd %s199, %s205
          %s207 = smul.addr %s203, 64
          %s208 = scalar_lea.hbm %s0, %s207
          %s209 = sshll.u32 %s202, 4
          %s210 = int_to_ptr.vmem [resolvable:$true] %s209
          %215 = dma.hbm_to_vmem [thread:$0]  %s208, 128, %s210, %s199, 64, 64, 4
        $region36: #{tpu_custom_call.1} parent=31 // pred_fallthru
          _
      $region32: #{tpu_custom_call.1} parent=5 // pred_fallthru
        _
      %p216 = scmp.le.s32.totalorder 1, %s18
      %p217 = scmp.lt.s32.totalorder %s18, 3
      %p218 = pnand %p216, %p217
      %p219 = pneg %p218
      // Predicated region
      $region37: #{tpu_custom_call.1} parent=5 // pred_check
        _
      $region38: #{tpu_custom_call.1} parent=5 // pred_check_branch
        %221 = sbr.rel (%p218) target = $region40
      $region39: #{tpu_custom_call.1} parent=5 // pred_region
        %s222 = ssub.s32 %s18, 1
        %s223 = sand.u32 %s31, 1
        %s224 = scalar_lea.sflag [#allocation3], %s223
        %s225 = sand.u32 %s31, 1
        %s226 = smul.addr %s225, 8
        %s227 = scalar_lea.vmem [#allocation2], %s226
        // Predicated region
        $region41: #{tpu_custom_call.1} parent=39 // pred_check
          %p228 = pneg %p44
        $region42: #{tpu_custom_call.1} parent=39 // pred_check_branch
          %230 = sbr.rel (%p228) target = $region44
        $region43: #{tpu_custom_call.1} parent=39 // pred_region
          %231 = dma.done %s224, 128
        $region44: #{tpu_custom_call.1} parent=39 // pred_fallthru
          _
        // Predicated region
        $region45: #{tpu_custom_call.1} parent=39 // pred_check
          %p232 = pneg %p65
        $region46: #{tpu_custom_call.1} parent=39 // pred_check_branch
          %234 = sbr.rel (%p232) target = $region48
        $region47: #{tpu_custom_call.1} parent=39 // pred_region
          %235 = dma.done [#allocation6], 384
        $region48: #{tpu_custom_call.1} parent=39 // pred_fallthru
          _
        %s236 = sand.u32 %s31, 1
        %s237 = scalar_lea.sflag [#allocation3], %s236
        %s238 = sand.u32 %s31, 1
        %s239 = smul.addr %s238, 8
        %s240 = scalar_lea.vmem [#allocation2], %s239
        %p241 = pneg %p44
        %p242 = pneg %p41
        %p243 = pneg %p65
        %p244 = pneg %p62
        %p245 = pneg %p86
        %p246 = pneg %p83
        %p247 = pneg %p107
        %p248 = pneg %p104
        %p249 = pneg %p128
        %p250 = pneg %p125
        %p251 = pneg %p154
        %p252 = pneg %p151
        %s253 = sand.u32 %s141, 1
        %s254 = scalar_lea.sflag [#allocation4], %s253
        %s255 = sand.u32 %s141, 1
        %s256 = smul.addr %s255, 16
        %s257 = scalar_lea.vmem [#allocation7], %s256
        %s258 = smul.u32 2, %s23
        %s259 = smul.u32 2, %s23
        %v261 = vld [vmem:[%s227] sm:$0xf]
        %v262 = vld [vmem:[%s227 + $0x4] sm:$0xf]
        %v263 = vld [vmem:[#allocation5] sm:$0xf]
        %v264 = vld [vmem:[#allocation5 + $0x4] sm:$0xf]
        %v265 = vld [vmem:[#allocation5 + $0x8] sm:$0xf]
        %v266 = vld [vmem:[#allocation5 + $0xc] sm:$0xf]
        %v267 = vld [vmem:[#allocation5 + $0x10] sm:$0xf]
        %v268 = vld [vmem:[#allocation5 + $0x14] sm:$0xf]
        %v269 = vld [vmem:[%s2] sm:$0x1]
        %v271 = vlaneseq
        %v272 = vshrl.u32 %v271, 7
        %v273 = vsub.s32 0, %v272
        %v274 = vrot.slane %v269, %v273
        %v278 = vunpack.c.l.b16 %v261
        %v279 = vunpack.c.l.b16 %v262
        %v280 = vpack.c.b16 %v279, %v278
        %v287 = vunpack.c.l.b16 %v263
        %v288 = vunpack.c.l.b16 %v264
        %v289 = vunpack.c.l.b16 %v265
        %v290 = vunpack.c.l.b16 %v266
        %v291 = vunpack.c.l.b16 %v267
        %v292 = vunpack.c.l.b16 %v268
        %v293 = vpack.c.b16 %v288, %v287
        %v294 = vpack.c.b16 %v290, %v289
        %v295 = vpack.c.b16 %v292, %v291
        %vm299 = vcmask 392192
        %v301 = vsel %vm299, %v280, 0
        %303 = vmatprep.subr.bf16.mxu0 0
        %304 = vmatpush1.bf16.msra.mxu0 %v293
        %305 = vmatprep.subr.bf16.mxu0 0
        %306 = vmatpush1.bf16.msra.mxu0 %v294
        %307 = vmatprep.subr.bf16.mxu0 0
        %308 = vmatpush1.bf16.msra.mxu0 %v295
        %309 = vmatprep.subr.bf16.mxu0 0
        %310 = vmatpush1.bf16.msra.mxu0 0
        %311 = vmatprep.subr.bf16.mxu0 0
        %312 = vmatpush1.bf16.msra.mxu0 0
        %313 = vmatprep.subr.bf16.mxu0 0
        %314 = vmatpush1.bf16.msra.mxu0 0
        %315 = vmatprep.subr.bf16.mxu0 0
        %316 = vmatpush1.bf16.msra.mxu0 0
        %317 = vmatprep.subr.bf16.mxu0 0
        %318 = vmatpush1.bf16.msra.mxu0 0
        %319 = vmatprep.subr.bf16.mxu0 0
        %320 = vmatpush1.bf16.msra.mxu0 0
        %321 = vmatprep.subr.bf16.mxu0 0
        %322 = vmatpush1.bf16.msra.mxu0 0
        %323 = vmatprep.subr.bf16.mxu0 0
        %324 = vmatpush1.bf16.msra.mxu0 0
        %325 = vmatprep.subr.bf16.mxu0 0
        %326 = vmatpush1.bf16.msra.mxu0 0
        %327 = vmatprep.subr.bf16.mxu0 0
        %328 = vmatpush1.bf16.msra.mxu0 0
        %329 = vmatprep.subr.bf16.mxu0 0
        %330 = vmatpush1.bf16.msra.mxu0 0
        %331 = vmatprep.subr.bf16.mxu0 0
        %332 = vmatpush1.bf16.msra.mxu0 0
        %333 = vmatprep.subr.bf16.mxu0 0
        %334 = vmatpush1.bf16.msra.mxu0 0
        %335 = vmatprep.mubr.bf16.mxu0 0
        %336 = vmatmul.mubr.bf16.gmra.mrb[0].mxu0 %v301
        %v337 = vpop.f32.mrb[0].mxu0
        %v338 = vadd.f32 %v274, %v337
        %v339 = vpop.f32.mrb[0].mxu0
        %v340 = vpop.f32.mrb[0].mxu0
        %v341 = vadd.f32 %v274, %v340
        %v342 = vpop.f32.mrb[0].mxu0
        %343 = vdwg.mxu0
        %344 = vadd.xlane.f32.xlu0 %v338
        %v345 = vpop.xlane.xlu0 %344
        %346 = vadd.xlane.f32.xlu0 %v341
        %v347 = vpop.xlane.xlu0 %346
        %v348 = vrcp.pop 128.0
        %v349 = vmul.f32 %v345, %v348
        %v350 = vmul.f32 %v347, %v348
        %v351 = vsub.f32 %v338, %v349
        %v352 = vsub.f32 %v341, %v350
        %v353 = vmul.f32 %v351, %v351
        %v354 = vmul.f32 %v352, %v352
        %355 = vadd.xlane.f32.xlu0 %v353
        %v356 = vpop.xlane.xlu0 %355
        %357 = vadd.xlane.f32.xlu0 %v354
        %v358 = vpop.xlane.xlu0 %357
        %v359 = vmul.f32 %v356, %v348
        %v360 = vmul.f32 %v358, %v348
        %v361 = vadd.f32 %v359, 1e-05
        %v362 = vadd.f32 %v360, 1e-05
        %v363 = vrsqrt.pop %v361
        %v364 = vrsqrt.pop %v362
        %v365 = vmul.f32 %v351, %v363
        %v366 = vmul.f32 %v352, %v364
        %v367 = vld [vmem:[%s3] sm:$0x1]
        %v369 = vlaneseq
        %v370 = vshrl.u32 %v369, 7
        %v371 = vsub.s32 0, %v370
        %v372 = vrot.slane %v367, %v371
        %v374 = vmul.f32 %v365, %v372
        %v375 = vmul.f32 %v366, %v372
        %v376 = vld [vmem:[%s4] sm:$0x1]
        %v378 = vlaneseq
        %v379 = vshrl.u32 %v378, 7
        %v380 = vsub.s32 0, %v379
        %v381 = vrot.slane %v376, %v380
        %v383 = vadd.f32 %v374, %v381
        %v384 = vadd.f32 %v375, %v381
        %385 = vst [vmem:[%s257] sm:$0xff] %v383
        %386 = vst [vmem:[%s257 + $0x8] sm:$0xff] %v384
        %s387 = sand.u32 %s141, 1
        %s388 = scalar_lea.sflag [#allocation4], %s387
        %s389 = sand.u32 %s141, 1
        %s390 = smul.addr %s389, 16
        %s391 = scalar_lea.vmem [#allocation7], %s390
        // Predicated region
        $region49: #{tpu_custom_call.1} parent=39 // pred_check
          %p392 = pneg %p151
        $region50: #{tpu_custom_call.1} parent=39 // pred_check_branch
          %394 = sbr.rel (%p392) target = $region52
        $region51: #{tpu_custom_call.1} parent=39 // pred_region
          %s395 = smul.u32 2, %s23
          %s397 = ssub.s32 256, 256
          %398 = vsyncadd %s388, %s397
          %s399 = smul.addr %s395, 128
          %s400 = scalar_lea.hbm %s5, %s399
          %s401 = sshll.u32 %s391, 4
          %s402 = int_to_ptr.vmem [resolvable:$true] %s401
          %407 = dma.vmem_to_hbm [thread:$0]  %s402, 256, %s400, %s388, 128, 128, 8
        $region52: #{tpu_custom_call.1} parent=39 // pred_fallthru
          _
      $region40: #{tpu_custom_call.1} parent=5 // pred_fallthru
        _
      %p408 = scmp.le.s32.totalorder 2, %s18
      // Predicated region
      $region53: #{tpu_custom_call.1} parent=5 // pred_check
        %p409 = pneg %p408
      $region54: #{tpu_custom_call.1} parent=5 // pred_check_branch
        %411 = sbr.rel (%p409) target = $region56
      $region55: #{tpu_custom_call.1} parent=5 // pred_region
        %s412 = ssub.s32 %s18, 2
        // Predicated region
        $region57: #{tpu_custom_call.1} parent=55 // pred_check
          %p413 = pneg %p157
        $region58: #{tpu_custom_call.1} parent=55 // pred_check_branch
          %415 = sbr.rel (%p413) target = $region60
        $region59: #{tpu_custom_call.1} parent=55 // pred_region
          %s416 = sand.u32 %s142, 1
          %s417 = scalar_lea.sflag [#allocation4], %s416
          %s418 = sand.u32 %s142, 1
          %s419 = smul.addr %s418, 16
          %s420 = scalar_lea.vmem [#allocation7], %s419
          %421 = dma.done %s417, 256
        $region60: #{tpu_custom_call.1} parent=55 // pred_fallthru
          _
      $region56: #{tpu_custom_call.1} parent=5 // pred_fallthru
        _
    $region6: #{tpu_custom_call.1} parent=1 // loop_footer
      %s22 = sadd.s32 1, %s18
    $region7: #{tpu_custom_call.1} parent=1 // loop_footer_branch
      %17 = sbr.rel target = $region3
    $region8: #{tpu_custom_call.1} parent=1 // loop_exit
      _
    %422 = vsyncpa [#allocation3], 1
    %s423 = scalar_lea.sflag [#allocation3], 1
    %424 = vsyncpa %s423, 1
    %425 = vsyncpa [#allocation6], 1
    %426 = vsyncpa [#allocation4], 1
    %s427 = scalar_lea.sflag [#allocation4], 1
    %428 = vsyncpa %s427, 1

</llo_original>
